<compile_context>
chip_gen: v6e
topology: v6e:2x2x1
jax: 0.10.0
libtpu: 0.0.40
codegen_flags: <defaults>
</compile_context>

<pallas_src>
import jax
import jax.numpy as jnp
from jax.experimental import pallas as pl
from jax.experimental.pallas import tpu as pltpu

LEAKY_SLOPE = 0.01

# Static geometry implied by the module.
C_IN, H_IN, W_IN = 17, 13, 10
H1, W1 = 7, 6            # conv1 output spatial (stride 2, pad 2, k 4)
H2, W2 = 6, 5            # conv2 output spatial (stride 1, pad 0, k 2)
R1 = H1 * W1             # 42 conv1-output rows per sample
R2 = 35                  # rows 0..34 of the shifted-slab conv2 accumulator
                         #   (row r = oh*6 + ow; ow==5 rows are dead, masked
                         #    out by zero rows in the permuted linear weight)


# ----------------------------------------------------------------------------
# Fused Pallas kernel: conv1 + lrelu + conv2 + lrelu + linear + sigmoid
# ----------------------------------------------------------------------------
def _disc_kernel(p_ref, w1_ref, w2_ref, wl_ref, bl_ref, o_ref):
    # p_ref : (1, 42, 272) bf16  im2col patches of one sample (kh, kw, cin order)
    # w1_ref: (272, 68)    bf16  conv1 weight as a matmul matrix
    # w2_ref: (4, 68, 136) bf16  conv2 weight, [kh*2+kw] -> (Cin, Cout)
    # wl_ref: (35, 136)    f32   linear weight permuted to (h*6+w, c), zero rows at w==5
    # bl_ref: (1, 1)       f32   linear bias
    # o_ref : (1, 1, 128)  f32   lane-broadcast sigmoid output

    # --- conv1 as one MXU matmul + LeakyReLU ---------------------------------
    c1 = jnp.dot(p_ref[0], w1_ref[...], preferred_element_type=jnp.float32)   # (42, 68)
    a1 = jnp.where(c1 > 0, c1, LEAKY_SLOPE * c1)                              # f32

    # --- conv2 (k=2, s=1, p=0) as 4 shifted matmuls (in-kernel im2col) -------
    # conv1 rows are flattened as r = oh*6 + ow; for tap (kh, kw) the needed
    # input row is r + kh*6 + kw, a contiguous 35-row slice of a1.
    acc = jnp.zeros((R2, 136), jnp.float32)
    for k in range(4):
        kh, kw = k // 2, k % 2
        s = kh * W1 + kw
        lhs = a1[s:s + R2, :].astype(jnp.bfloat16)                            # (35, 68)
        acc = acc + jnp.dot(lhs, w2_ref[k], preferred_element_type=jnp.float32)
    a2 = jnp.where(acc > 0, acc, LEAKY_SLOPE * acc)                           # (35, 136)

    # --- linear(4080 -> 1) + sigmoid -----------------------------------------
    # Weight is pre-permuted to the same (h*6+w, c) layout (dead rows zeroed),
    # so the flatten/transpose is free: logit = sum(a2 * wl) + b.
    prod = a2 * wl_ref[...]
    row = jnp.sum(prod, axis=1, keepdims=True)                                # (35, 1)
    logit = jnp.sum(row, axis=0, keepdims=True) + bl_ref[...]                 # (1, 1)
    sig = 1.0 / (1.0 + jnp.exp(-logit))
    o_ref[...] = jnp.broadcast_to(sig[None], (1, 1, 128))                     # lane-dense


# ----------------------------------------------------------------------------
# One-time weight preparation (hoisted out of the forward path)
# ----------------------------------------------------------------------------
def prepare_params(conv1_w, conv2_w, lin_w, lin_b):
    # conv1 weight (O=68, I=17, kh=4, kw=4) -> (kh*kw*I, O) matching patch order
    w1 = jnp.transpose(conv1_w, (2, 3, 1, 0)).reshape(4 * 4 * C_IN, 68)
    # conv2 weight (O=136, I=68, kh=2, kw=2) -> (kh*2+kw, I, O)
    w2 = jnp.transpose(conv2_w, (2, 3, 1, 0)).reshape(4, 68, 136)
    # linear weight (1, 4080) indexed as c*30 + h*5 + w  ->  (h*6 + w, c) slab,
    # width padded 5 -> 6 with zeros so dead conv2 rows contribute nothing.
    wl = jnp.transpose(lin_w.reshape(136, H2, W2), (1, 2, 0))                 # (6, 5, 136)
    wl = jnp.pad(wl, ((0, 0), (0, 1), (0, 0))).reshape(H2 * W1, 136)[:R2]     # (35, 136)
    return {
        "conv1_wm": w1.astype(jnp.bfloat16),
        "conv2_wm": w2.astype(jnp.bfloat16),
        "linear_wm": wl.astype(jnp.float32),
        "linear_b": lin_b.reshape(1, 1).astype(jnp.float32),
    }


def init_params(key):
    """PyTorch-default-style uniform init, then layout prep."""
    ks = jax.random.split(key, 4)

    def u(k, shape, fan_in):
        bound = 1.0 / float(fan_in) ** 0.5
        return jax.random.uniform(k, shape, jnp.float32, -bound, bound)

    conv1_w = u(ks[0], (68, C_IN, 4, 4), C_IN * 16)       # Conv2d(17, 68, 4, 2, 2)
    conv2_w = u(ks[1], (136, 68, 2, 2), 68 * 4)           # Conv2d(68, 136, 2, 1, 0)
    lin_w = u(ks[2], (1, 136 * H2 * W2), 136 * H2 * W2)   # Linear(4080, 1)
    lin_b = u(ks[3], (1,), 136 * H2 * W2)
    return prepare_params(conv1_w, conv2_w, lin_w, lin_b)


# ----------------------------------------------------------------------------
# Forward pass
# ----------------------------------------------------------------------------
def discriminator_forward(params, x):
    """x: (B, 17, 13, 10) NCHW f32  ->  (B, 1) f32 in [0, 1]."""
    B = x.shape[0]

    # Input-layer im2col (stride-2 gather) in plain JAX; everything else fused.
    x_nhwc = jnp.transpose(x, (0, 2, 3, 1))                                   # (B, 13, 10, 17)
    xp = jnp.pad(x_nhwc, ((0, 0), (2, 2), (2, 2), (0, 0)))                    # (B, 17, 14, 17)
    cols = []
    for kh in range(4):
        for kw in range(4):
            cols.append(xp[:, kh:kh + 2 * H1 - 1:2, kw:kw + 2 * W1 - 1:2, :])  # (B, 7, 6, 17)
    patches = jnp.concatenate(cols, axis=-1).reshape(B, R1, 4 * 4 * C_IN)
    patches = patches.astype(jnp.bfloat16)                                    # (B, 42, 272)

    out = pl.pallas_call(
        _disc_kernel,
        grid=(B,),
        in_specs=[
            pl.BlockSpec((1, R1, 4 * 4 * C_IN), lambda b: (b, 0, 0)),         # patches
            pl.BlockSpec((4 * 4 * C_IN, 68), lambda b: (0, 0)),               # conv1 W
            pl.BlockSpec((4, 68, 136), lambda b: (0, 0, 0)),                  # conv2 W
            pl.BlockSpec((R2, 136), lambda b: (0, 0)),                        # linear W
            pl.BlockSpec((1, 1), lambda b: (0, 0)),                           # linear b
        ],
        out_specs=pl.BlockSpec((1, 1, 128), lambda b: (b, 0, 0)),
        out_shape=jax.ShapeDtypeStruct((B, 1, 128), jnp.float32),
        compiler_params=pltpu.CompilerParams(
            dimension_semantics=("parallel",)),                               # v7x: 2 TCs
    )(patches, params["conv1_wm"], params["conv2_wm"],
      params["linear_wm"], params["linear_b"])

    return out[:, 0, :1]                                                      # (B, 1)


# ----------------------------------------------------------------------------
if __name__ == "__main__":
    key = jax.random.PRNGKey(0)
    pkey, xkey = jax.random.split(key)
    params = init_params(pkey)
    x = jax.random.normal(xkey, (2, C_IN, H_IN, W_IN), dtype=jnp.float32)     # batch = 2

    fwd = jax.jit(discriminator_forward)
    out = jax.block_until_ready(fwd(params, x))

    assert out.shape == (2, 1), out.shape
    assert out.dtype == jnp.float32
    assert bool(jnp.all((out >= 0.0) & (out <= 1.0)))                         # sigmoid range
    print("KERNEL_OK")
</pallas_src>

<mosaic_0001>
module attributes {stable_mosaic.version = 11 : i64} {
  func.func @_disc_kernel(%arg0: i32, %arg1: memref<1x42x272xbf16, #tpu.memory_space<vmem>>, %arg2: memref<272x68xbf16, #tpu.memory_space<vmem>>, %arg3: memref<4x68x136xbf16, #tpu.memory_space<vmem>>, %arg4: memref<35x136xf32, #tpu.memory_space<vmem>>, %arg5: memref<1x1xf32, #tpu.memory_space<vmem>>, %arg6: memref<1x1x128xf32, #tpu.memory_space<vmem>>) attributes {dimension_semantics = [#tpu.dimension_semantics<parallel>], iteration_bounds = array<i64: 2>, scalar_prefetch = 0 : i64, scratch_operands = 0 : i64, tpu.core_type = #tpu.core_type<tc>, window_params = [{transform_indices = @transform_0, window_bounds = array<i64: 1, 42, 272>}, {pipeline_mode = #tpu.pipeline_mode<synchronous>, transform_indices = @transform_1, window_bounds = array<i64: 272, 68>}, {pipeline_mode = #tpu.pipeline_mode<synchronous>, transform_indices = @transform_2, window_bounds = array<i64: 4, 68, 136>}, {pipeline_mode = #tpu.pipeline_mode<synchronous>, transform_indices = @transform_3, window_bounds = array<i64: 35, 136>}, {pipeline_mode = #tpu.pipeline_mode<synchronous>, transform_indices = @transform_4, window_bounds = array<i64: 1, 1>}, {transform_indices = @transform_5, window_bounds = array<i64: 1, 1, 128>}]} {
    %c0 = arith.constant 0 : index
    %c0_0 = arith.constant 0 : index
    %c0_1 = arith.constant 0 : index
    %0 = vector.load %arg1[%c0, %c0_0, %c0_1] : memref<1x42x272xbf16, #tpu.memory_space<vmem>>, vector<1x42x272xbf16>
    %1 = vector.shape_cast %0 : vector<1x42x272xbf16> to vector<42x272xbf16>
    %c0_2 = arith.constant 0 : index
    %c0_3 = arith.constant 0 : index
    %2 = vector.load %arg2[%c0_2, %c0_3] : memref<272x68xbf16, #tpu.memory_space<vmem>>, vector<272x68xbf16>
    %cst = arith.constant dense<0.000000e+00> : vector<42x68xf32>
    %3 = tpu.matmul %1, %2, %cst {dimension_numbers = #tpu.dot_dimension_numbers<[1], [0], [0], [1], [0, 0, 1, 1], [], []>} : vector<42x272xbf16>, vector<272x68xbf16>, vector<42x68xf32> -> vector<42x68xf32>
    %cst_4 = arith.constant 0.000000e+00 : f32
    %4 = vector.broadcast %cst_4 : f32 to vector<42x68xf32>
    %5 = arith.cmpf ogt, %3, %4 : vector<42x68xf32>
    %cst_5 = arith.constant 0.00999999977 : f32
    %6 = vector.broadcast %cst_5 : f32 to vector<42x68xf32>
    %7 = arith.mulf %6, %3 : vector<42x68xf32>
    %8 = arith.select %5, %3, %7 : vector<42x68xi1>, vector<42x68xf32>
    %cst_6 = arith.constant 0.000000e+00 : f32
    %9 = vector.broadcast %cst_6 : f32 to vector<35x136xf32>
    %10 = vector.extract_strided_slice %8 {offsets = [0, 0], sizes = [35, 68], strides = [1, 1]} : vector<42x68xf32> to vector<35x68xf32>
    %11 = arith.truncf %10 : vector<35x68xf32> to vector<35x68xbf16>
    %c0_7 = arith.constant 0 : index
    %c0_8 = arith.constant 0 : index
    %c0_9 = arith.constant 0 : index
    %12 = vector.load %arg3[%c0_7, %c0_8, %c0_9] : memref<4x68x136xbf16, #tpu.memory_space<vmem>>, vector<1x68x136xbf16>
    %13 = vector.shape_cast %12 : vector<1x68x136xbf16> to vector<68x136xbf16>
    %cst_10 = arith.constant dense<0.000000e+00> : vector<35x136xf32>
    %14 = tpu.matmul %11, %13, %cst_10 {dimension_numbers = #tpu.dot_dimension_numbers<[1], [0], [0], [1], [0, 0, 1, 1], [], []>} : vector<35x68xbf16>, vector<68x136xbf16>, vector<35x136xf32> -> vector<35x136xf32>
    %15 = arith.addf %9, %14 : vector<35x136xf32>
    %16 = vector.extract_strided_slice %8 {offsets = [1, 0], sizes = [35, 68], strides = [1, 1]} : vector<42x68xf32> to vector<35x68xf32>
    %17 = arith.truncf %16 : vector<35x68xf32> to vector<35x68xbf16>
    %c1 = arith.constant 1 : index
    %c0_11 = arith.constant 0 : index
    %c0_12 = arith.constant 0 : index
    %18 = vector.load %arg3[%c1, %c0_11, %c0_12] : memref<4x68x136xbf16, #tpu.memory_space<vmem>>, vector<1x68x136xbf16>
    %19 = vector.shape_cast %18 : vector<1x68x136xbf16> to vector<68x136xbf16>
    %cst_13 = arith.constant dense<0.000000e+00> : vector<35x136xf32>
    %20 = tpu.matmul %17, %19, %cst_13 {dimension_numbers = #tpu.dot_dimension_numbers<[1], [0], [0], [1], [0, 0, 1, 1], [], []>} : vector<35x68xbf16>, vector<68x136xbf16>, vector<35x136xf32> -> vector<35x136xf32>
    %21 = arith.addf %15, %20 : vector<35x136xf32>
    %22 = vector.extract_strided_slice %8 {offsets = [6, 0], sizes = [35, 68], strides = [1, 1]} : vector<42x68xf32> to vector<35x68xf32>
    %23 = arith.truncf %22 : vector<35x68xf32> to vector<35x68xbf16>
    %c2 = arith.constant 2 : index
    %c0_14 = arith.constant 0 : index
    %c0_15 = arith.constant 0 : index
    %24 = vector.load %arg3[%c2, %c0_14, %c0_15] : memref<4x68x136xbf16, #tpu.memory_space<vmem>>, vector<1x68x136xbf16>
    %25 = vector.shape_cast %24 : vector<1x68x136xbf16> to vector<68x136xbf16>
    %cst_16 = arith.constant dense<0.000000e+00> : vector<35x136xf32>
    %26 = tpu.matmul %23, %25, %cst_16 {dimension_numbers = #tpu.dot_dimension_numbers<[1], [0], [0], [1], [0, 0, 1, 1], [], []>} : vector<35x68xbf16>, vector<68x136xbf16>, vector<35x136xf32> -> vector<35x136xf32>
    %27 = arith.addf %21, %26 : vector<35x136xf32>
    %28 = vector.extract_strided_slice %8 {offsets = [7, 0], sizes = [35, 68], strides = [1, 1]} : vector<42x68xf32> to vector<35x68xf32>
    %29 = arith.truncf %28 : vector<35x68xf32> to vector<35x68xbf16>
    %c3 = arith.constant 3 : index
    %c0_17 = arith.constant 0 : index
    %c0_18 = arith.constant 0 : index
    %30 = vector.load %arg3[%c3, %c0_17, %c0_18] : memref<4x68x136xbf16, #tpu.memory_space<vmem>>, vector<1x68x136xbf16>
    %31 = vector.shape_cast %30 : vector<1x68x136xbf16> to vector<68x136xbf16>
    %cst_19 = arith.constant dense<0.000000e+00> : vector<35x136xf32>
    %32 = tpu.matmul %29, %31, %cst_19 {dimension_numbers = #tpu.dot_dimension_numbers<[1], [0], [0], [1], [0, 0, 1, 1], [], []>} : vector<35x68xbf16>, vector<68x136xbf16>, vector<35x136xf32> -> vector<35x136xf32>
    %33 = arith.addf %27, %32 : vector<35x136xf32>
    %cst_20 = arith.constant 0.000000e+00 : f32
    %34 = vector.broadcast %cst_20 : f32 to vector<35x136xf32>
    %35 = arith.cmpf ogt, %33, %34 : vector<35x136xf32>
    %cst_21 = arith.constant 0.00999999977 : f32
    %36 = vector.broadcast %cst_21 : f32 to vector<35x136xf32>
    %37 = arith.mulf %36, %33 : vector<35x136xf32>
    %38 = arith.select %35, %33, %37 : vector<35x136xi1>, vector<35x136xf32>
    %c0_22 = arith.constant 0 : index
    %c0_23 = arith.constant 0 : index
    %39 = vector.load %arg4[%c0_22, %c0_23] : memref<35x136xf32, #tpu.memory_space<vmem>>, vector<35x136xf32>
    %40 = arith.mulf %38, %39 : vector<35x136xf32>
    %cst_24 = arith.constant dense<0.000000e+00> : vector<35xf32>
    %41 = vector.multi_reduction <add>, %40, %cst_24 [1] : vector<35x136xf32> to vector<35xf32>
    %42 = vector.shape_cast %41 : vector<35xf32> to vector<35x1xf32>
    %cst_25 = arith.constant dense<0.000000e+00> : vector<1xf32>
    %43 = vector.multi_reduction <add>, %42, %cst_25 [0] : vector<35x1xf32> to vector<1xf32>
    %44 = vector.shape_cast %43 : vector<1xf32> to vector<1x1xf32>
    %c0_26 = arith.constant 0 : index
    %c0_27 = arith.constant 0 : index
    %45 = vector.load %arg5[%c0_26, %c0_27] : memref<1x1xf32, #tpu.memory_space<vmem>>, vector<1x1xf32>
    %46 = arith.addf %44, %45 : vector<1x1xf32>
    %cst_28 = arith.constant 0.000000e+00 : f32
    %47 = vector.broadcast %cst_28 : f32 to vector<1x1xf32>
    %48 = arith.subf %47, %46 : vector<1x1xf32>
    %49 = math.exp %48 : vector<1x1xf32>
    %cst_29 = arith.constant 1.000000e+00 : f32
    %50 = vector.broadcast %cst_29 : f32 to vector<1x1xf32>
    %51 = arith.addf %50, %49 : vector<1x1xf32>
    %cst_30 = arith.constant 1.000000e+00 : f32
    %52 = vector.broadcast %cst_30 : f32 to vector<1x1xf32>
    %53 = arith.divf %52, %51 : vector<1x1xf32>
    %54 = vector.shape_cast %53 : vector<1x1xf32> to vector<1x1x1xf32>
    %55 = vector.shape_cast %54 : vector<1x1x1xf32> to vector<1x1x1xf32>
    %56 = vector.broadcast %55 : vector<1x1x1xf32> to vector<1x1x128xf32>
    %c0_31 = arith.constant 0 : index
    %c0_32 = arith.constant 0 : index
    %c0_33 = arith.constant 0 : index
    %57 = vector.load %arg6[%c0_31, %c0_32, %c0_33] : memref<1x1x128xf32, #tpu.memory_space<vmem>>, vector<1x1x128xf32>
    tpu.vector_store %arg6[%c0_31, %c0_32, %c0_33], %56 {strides = array<i32>} : memref<1x1x128xf32, #tpu.memory_space<vmem>>, vector<1x1x128xf32>,
    return
  }
  func.func @transform_0(%arg0: i32) -> (i32, i32, i32) {
    %c0_i32 = arith.constant 0 : i32
    %c0_i32_0 = arith.constant 0 : i32
    %c0_i32_1 = arith.constant 0 : i32
    return %arg0, %c0_i32, %c0_i32_0 : i32, i32, i32
  }
  func.func @transform_1(%arg0: i32) -> (i32, i32) {
    %c0_i32 = arith.constant 0 : i32
    %c0_i32_0 = arith.constant 0 : i32
    %c0_i32_1 = arith.constant 0 : i32
    return %c0_i32, %c0_i32_0 : i32, i32
  }
  func.func @transform_2(%arg0: i32) -> (i32, i32, i32) {
    %c0_i32 = arith.constant 0 : i32
    %c0_i32_0 = arith.constant 0 : i32
    %c0_i32_1 = arith.constant 0 : i32
    %c0_i32_2 = arith.constant 0 : i32
    return %c0_i32, %c0_i32_0, %c0_i32_1 : i32, i32, i32
  }
  func.func @transform_3(%arg0: i32) -> (i32, i32) {
    %c0_i32 = arith.constant 0 : i32
    %c0_i32_0 = arith.constant 0 : i32
    %c0_i32_1 = arith.constant 0 : i32
    return %c0_i32, %c0_i32_0 : i32, i32
  }
  func.func @transform_4(%arg0: i32) -> (i32, i32) {
    %c0_i32 = arith.constant 0 : i32
    %c0_i32_0 = arith.constant 0 : i32
    %c0_i32_1 = arith.constant 0 : i32
    return %c0_i32, %c0_i32_0 : i32, i32
  }
  func.func @transform_5(%arg0: i32) -> (i32, i32, i32) {
    %c0_i32 = arith.constant 0 : i32
    %c0_i32_0 = arith.constant 0 : i32
    %c0_i32_1 = arith.constant 0 : i32
    return %arg0, %c0_i32, %c0_i32_0 : i32, i32, i32
  }
}

</mosaic_0001>

<llo_original>
// kernel: discriminator_forward.1
$region0: #{discriminator_forward.1}
  #allocation0 [shape = 'u32[]', space=smem, size = 0x4, offset = 0x4, fixed_abs, tag = 'smem constant byte address 0x4 - core index']
  #allocation1 [shape = 'u32[144,128]{1,0:T(1,128)}', space=vmem, size = 0x12000, scoped, tag = 'internal scratch']
  #allocation2 [shape = 'f32[1,1]{1,0:T(1,128)S(1)}', space=vmem, size = 0x200, scoped, tag = 'scoped memory for discriminator_forward.1']
  %s0 = inlined_call_operand.vmem [shape: bf16[2,42,272], index: 0, kind: input, shape index: {}]
  %s1 = inlined_call_operand.vmem [shape: bf16[272,68], index: 1, kind: input, shape index: {}]
  %s2 = inlined_call_operand.vmem [shape: bf16[4,68,136], index: 2, kind: input, shape index: {}]
  %s3 = inlined_call_operand.vmem [shape: f32[35,136], index: 3, kind: input, shape index: {}]
  %s4 = inlined_call_operand.<no memory space> [shape: f32[1,1], index: 4, kind: input, shape index: {}]
  %s5 = inlined_call_operand.vmem [shape: f32[2,1,128], index: 5, kind: output, shape index: {}]
  %s6 = sld [smem:[#allocation0]]
  $region53: #{discriminator_forward.1} parent=0
    _
  %s8 = ssub.s32 1, %s6
  %s9 = scalar_select 0, %s8, %s6
  %v10 = vstv %s4
  %11 = vst [vmem:[#allocation2] sm:$0x1] %v10
  loop: start=0, step=1, limit=4
  $region2: #{discriminator_forward.1} parent=0 // loop_pre_header
    _
  $region3: #{discriminator_forward.1} parent=0 // loop_header
    %s13 = sphi 0, %s17
    %p14 = scmp.ge.s32.totalorder %s13, 4
    %s23 = sphi 0, %s25
    %s26 = sphi 0, %s23
    %s27 = sphi 0, %s26
    %s43 = sphi 0, %s27
    %s47 = sphi 0, %s47
    %s49 = sphi 0, %s47
    %s50 = sphi 0, %s49
    %s64 = sphi 0, %s50
    %s68 = sphi 0, %s68
    %s70 = sphi 0, %s68
    %s71 = sphi 0, %s70
    %s85 = sphi 0, %s71
    %s89 = sphi 0, %s89
    %s91 = sphi 0, %s89
    %s92 = sphi 0, %s91
    %s106 = sphi 0, %s92
    %s110 = sphi 0, %s110
    %s112 = sphi 0, %s110
    %s113 = sphi 0, %s112
    %s127 = sphi 0, %s113
    %s133 = sphi 0, %s135
    %s136 = sphi 0, %s133
    %s137 = sphi 0, %s136
    %s153 = sphi 0, %s137
  $region4: #{discriminator_forward.1} parent=0 // loop_header_branch
    %16 = sbr.rel (%p14) target = $region8
  $region5: #{discriminator_forward.1} parent=0 // loop_body
    %s18 = ssub.s32 %s13, 1
    %s19 = ssub.s32 %s13, 2
    %s20 = sadd.s32 %s13, 1
    %s21 = ssub.s32 %s13, %s20
    %p22 = scmp.eq.s32.totalorder %s21, 0
    %s24 = sadd.s32 %s23, 1
    %s25 = scalar_select %p22, %s23, %s24
    %p28 = pneg %p22
    %p29 = scmp.eq.s32.totalorder %s13, 1
    %p30 = por %p28, %p29
    %p31 = scmp.ne.s32.totalorder %s23, %s26
    %p32 = scmp.eq.s32.totalorder %s13, 0
    %p33 = por %p31, %p32
    %p34 = scmp.ne.s32.totalorder %s23, %s26
    %p35 = scmp.eq.s32.totalorder %s18, 1
    %p36 = por %p34, %p35
    %p37 = scmp.ne.s32.totalorder %s26, %s27
    %p38 = scmp.eq.s32.totalorder %s18, 0
    %p39 = por %p37, %p38
    %p40 = scmp.ne.s32.totalorder %s26, %s27
    %p41 = scmp.eq.s32.totalorder %s19, 1
    %p42 = por %p40, %p41
    %p44 = scmp.ne.s32.totalorder %s27, %s43
    %p45 = scmp.eq.s32.totalorder %s19, 0
    %p46 = por %p44, %p45
    %s48 = sadd.s32 %s47, 1
    %p51 = scmp.eq.s32.totalorder %s13, 1
    %p52 = scmp.ne.s32.totalorder %s47, %s49
    %p53 = scmp.eq.s32.totalorder %s13, 0
    %p54 = por %p52, %p53
    %p55 = scmp.ne.s32.totalorder %s47, %s49
    %p56 = scmp.eq.s32.totalorder %s18, 1
    %p57 = por %p55, %p56
    %p58 = scmp.ne.s32.totalorder %s49, %s50
    %p59 = scmp.eq.s32.totalorder %s18, 0
    %p60 = por %p58, %p59
    %p61 = scmp.ne.s32.totalorder %s49, %s50
    %p62 = scmp.eq.s32.totalorder %s19, 1
    %p63 = por %p61, %p62
    %p65 = scmp.ne.s32.totalorder %s50, %s64
    %p66 = scmp.eq.s32.totalorder %s19, 0
    %p67 = por %p65, %p66
    %s69 = sadd.s32 %s68, 1
    %p72 = scmp.eq.s32.totalorder %s13, 1
    %p73 = scmp.ne.s32.totalorder %s68, %s70
    %p74 = scmp.eq.s32.totalorder %s13, 0
    %p75 = por %p73, %p74
    %p76 = scmp.ne.s32.totalorder %s68, %s70
    %p77 = scmp.eq.s32.totalorder %s18, 1
    %p78 = por %p76, %p77
    %p79 = scmp.ne.s32.totalorder %s70, %s71
    %p80 = scmp.eq.s32.totalorder %s18, 0
    %p81 = por %p79, %p80
    %p82 = scmp.ne.s32.totalorder %s70, %s71
    %p83 = scmp.eq.s32.totalorder %s19, 1
    %p84 = por %p82, %p83
    %p86 = scmp.ne.s32.totalorder %s71, %s85
    %p87 = scmp.eq.s32.totalorder %s19, 0
    %p88 = por %p86, %p87
    %s90 = sadd.s32 %s89, 1
    %p93 = scmp.eq.s32.totalorder %s13, 1
    %p94 = scmp.ne.s32.totalorder %s89, %s91
    %p95 = scmp.eq.s32.totalorder %s13, 0
    %p96 = por %p94, %p95
    %p97 = scmp.ne.s32.totalorder %s89, %s91
    %p98 = scmp.eq.s32.totalorder %s18, 1
    %p99 = por %p97, %p98
    %p100 = scmp.ne.s32.totalorder %s91, %s92
    %p101 = scmp.eq.s32.totalorder %s18, 0
    %p102 = por %p100, %p101
    %p103 = scmp.ne.s32.totalorder %s91, %s92
    %p104 = scmp.eq.s32.totalorder %s19, 1
    %p105 = por %p103, %p104
    %p107 = scmp.ne.s32.totalorder %s92, %s106
    %p108 = scmp.eq.s32.totalorder %s19, 0
    %p109 = por %p107, %p108
    %s111 = sadd.s32 %s110, 1
    %p114 = scmp.eq.s32.totalorder %s13, 1
    %p115 = scmp.ne.s32.totalorder %s110, %s112
    %p116 = scmp.eq.s32.totalorder %s13, 0
    %p117 = por %p115, %p116
    %p118 = scmp.ne.s32.totalorder %s110, %s112
    %p119 = scmp.eq.s32.totalorder %s18, 1
    %p120 = por %p118, %p119
    %p121 = scmp.ne.s32.totalorder %s112, %s113
    %p122 = scmp.eq.s32.totalorder %s18, 0
    %p123 = por %p121, %p122
    %p124 = scmp.ne.s32.totalorder %s112, %s113
    %p125 = scmp.eq.s32.totalorder %s19, 1
    %p126 = por %p124, %p125
    %p128 = scmp.ne.s32.totalorder %s113, %s127
    %p129 = scmp.eq.s32.totalorder %s19, 0
    %p130 = por %p128, %p129
    %s131 = ssub.s32 %s13, %s20
    %p132 = scmp.eq.s32.totalorder %s131, 0
    %s134 = sadd.s32 %s133, 1
    %s135 = scalar_select %p132, %s133, %s134
    %p138 = pneg %p132
    %p139 = scmp.eq.s32.totalorder %s13, 1
    %p140 = por %p138, %p139
    %p141 = scmp.ne.s32.totalorder %s133, %s136
    %p142 = scmp.eq.s32.totalorder %s13, 0
    %p143 = por %p141, %p142
    %p144 = scmp.ne.s32.totalorder %s133, %s136
    %p145 = scmp.eq.s32.totalorder %s18, 1
    %p146 = por %p144, %p145
    %p147 = scmp.ne.s32.totalorder %s136, %s137
    %p148 = scmp.eq.s32.totalorder %s18, 0
    %p149 = por %p147, %p148
    %p150 = scmp.ne.s32.totalorder %s136, %s137
    %p151 = scmp.eq.s32.totalorder %s19, 1
    %p152 = por %p150, %p151
    %p154 = scmp.ne.s32.totalorder %s137, %s153
    %p155 = scmp.eq.s32.totalorder %s19, 0
    %p156 = por %p154, %p155
    %p157 = scmp.le.s32.totalorder 1, %s13
    %p158 = scmp.lt.s32.totalorder %s13, 3
    %p159 = pnand %p157, %p158
    %p160 = pneg %p159
    // Predicated region
    $region9: #{discriminator_forward.1} parent=5 // pred_check
      _
    $region10: #{discriminator_forward.1} parent=5 // pred_check_branch
      %162 = sbr.rel (%p159) target = $region12
    $region11: #{discriminator_forward.1} parent=5 // pred_region
      %s163 = ssub.s32 %s13, 1
      // Predicated region
      $region13: #{discriminator_forward.1} parent=11 // pred_check
        %p164 = pneg %p60
      $region14: #{discriminator_forward.1} parent=11 // pred_check_branch
        %166 = sbr.rel (%p164) target = $region16
      $region15: #{discriminator_forward.1} parent=11 // pred_region
        _
      $region16: #{discriminator_forward.1} parent=11 // pred_fallthru
        _
      // Predicated region
      $region17: #{discriminator_forward.1} parent=11 // pred_check
        %p167 = pneg %p81
      $region18: #{discriminator_forward.1} parent=11 // pred_check_branch
        %169 = sbr.rel (%p167) target = $region20
      $region19: #{discriminator_forward.1} parent=11 // pred_region
        _
      $region20: #{discriminator_forward.1} parent=11 // pred_fallthru
        _
      // Predicated region
      $region21: #{discriminator_forward.1} parent=11 // pred_check
        %p170 = pneg %p102
      $region22: #{discriminator_forward.1} parent=11 // pred_check_branch
        %172 = sbr.rel (%p170) target = $region24
      $region23: #{discriminator_forward.1} parent=11 // pred_region
        _
      $region24: #{discriminator_forward.1} parent=11 // pred_fallthru
        _
      // Predicated region
      $region25: #{discriminator_forward.1} parent=11 // pred_check
        %p173 = pneg %p123
      $region26: #{discriminator_forward.1} parent=11 // pred_check_branch
        %175 = sbr.rel (%p173) target = $region28
      $region27: #{discriminator_forward.1} parent=11 // pred_region
        _
      $region28: #{discriminator_forward.1} parent=11 // pred_fallthru
        _
    $region12: #{discriminator_forward.1} parent=5 // pred_fallthru
      _
    %p176 = scmp.lt.s32.totalorder %s13, 2
    // Predicated region
    $region29: #{discriminator_forward.1} parent=5 // pred_check
      %p177 = pneg %p176
    $region30: #{discriminator_forward.1} parent=5 // pred_check_branch
      %179 = sbr.rel (%p177) target = $region32
    $region31: #{discriminator_forward.1} parent=5 // pred_region
      // Predicated region
      $region33: #{discriminator_forward.1} parent=31 // pred_check
        %p180 = pneg %p33
      $region34: #{discriminator_forward.1} parent=31 // pred_check_branch
        %182 = sbr.rel (%p180) target = $region36
      $region35: #{discriminator_forward.1} parent=31 // pred_region
        %p183 = scmp.lt.s32.totalorder %s13, 1
        %s184 = scalar_select %p183, %s13, 1
        %s185 = smul.addr %s184, 18
        %s186 = smul.addr %s185, 4
        %s187 = scalar_lea.vmem %s0, %s186
      $region36: #{discriminator_forward.1} parent=31 // pred_fallthru
        _
    $region32: #{discriminator_forward.1} parent=5 // pred_fallthru
      _
    %p188 = scmp.le.s32.totalorder 1, %s13
    %p189 = scmp.lt.s32.totalorder %s13, 3
    %p190 = pnand %p188, %p189
    %p191 = pneg %p190
    // Predicated region
    $region37: #{discriminator_forward.1} parent=5 // pred_check
      _
    $region38: #{discriminator_forward.1} parent=5 // pred_check_branch
      %193 = sbr.rel (%p190) target = $region40
    $region39: #{discriminator_forward.1} parent=5 // pred_region
      %s194 = ssub.s32 %s13, 1
      %p195 = scmp.lt.s32.totalorder %s18, 1
      %s196 = scalar_select %p195, %s18, 1
      %s197 = smul.addr %s196, 18
      %s198 = smul.addr %s197, 4
      %s199 = scalar_lea.vmem %s0, %s198
      %p200 = pneg %p39
      %p201 = pneg %p36
      %p202 = pneg %p60
      %p203 = pneg %p57
      %p204 = pneg %p81
      %p205 = pneg %p78
      %p206 = pneg %p102
      %p207 = pneg %p99
      %p208 = pneg %p123
      %p209 = pneg %p120
      %p210 = pneg %p149
      %p211 = pneg %p146
      %p212 = scmp.lt.s32.totalorder %s18, 1
      %s213 = scalar_select %p212, %s18, 1
      %s214 = scalar_lea.vmem %s5, %s213
      %p215 = scmp.lt.s32.totalorder %s18, 1
      %s216 = scalar_select %p215, %s18, 1
      %s217 = smul.addr %s216, 18
      %s218 = smul.addr %s217, 4
      %s219 = scalar_lea.vmem %s0, %s218
      %p220 = scmp.lt.s32.totalorder %s18, 1
      %s221 = scalar_select %p220, %s18, 1
      %s222 = scalar_lea.vmem %s5, %s221
      %v224 = vld [vmem:[%s219] sm:$0xff]
      %v225 = vld [vmem:[%s219 + $0x8] sm:$0xf]
      %v226 = vld [vmem:[%s219 + $0xc] sm:$0xff]
      %v227 = vld [vmem:[%s219 + $0x14] sm:$0xf]
      %v228 = vld [vmem:[%s219 + $0x18] sm:$0xff]
      %v229 = vld [vmem:[%s219 + $0x20] sm:$0xf]
      %v230 = vld [vmem:[%s219 + $0x24] sm:$0xff]
      %v231 = vld [vmem:[%s219 + $0x2c] sm:$0xf]
      %v232 = vld [vmem:[%s219 + $0x30] sm:$0xff]
      %v233 = vld [vmem:[%s219 + $0x38] sm:$0xf]
      %v234 = vld [vmem:[%s219 + $0x3c] sm:$0x11]
      %v235 = vld [vmem:[%s219 + $0x44] sm:$0x1]
      %v236 = vld [vmem:[%s1] sm:$0xf]
      %v237 = vld [vmem:[%s1 + $0x4] sm:$0xf]
      %v238 = vld [vmem:[%s1 + $0x8] sm:$0xf]
      %v239 = vld [vmem:[%s1 + $0xc] sm:$0xf]
      %v240 = vld [vmem:[%s1 + $0x10] sm:$0xf]
      %v241 = vld [vmem:[%s1 + $0x14] sm:$0xf]
      %v242 = vld [vmem:[%s1 + $0x18] sm:$0xf]
      %v243 = vld [vmem:[%s1 + $0x1c] sm:$0xf]
      %v244 = vld [vmem:[%s1 + $0x20] sm:$0xf]
      %v245 = vld [vmem:[%s1 + $0x24] sm:$0xf]
      %v246 = vld [vmem:[%s1 + $0x28] sm:$0xf]
      %v247 = vld [vmem:[%s1 + $0x2c] sm:$0xf]
      %v248 = vld [vmem:[%s1 + $0x30] sm:$0xf]
      %v249 = vld [vmem:[%s1 + $0x34] sm:$0xf]
      %v250 = vld [vmem:[%s1 + $0x38] sm:$0xf]
      %v251 = vld [vmem:[%s1 + $0x3c] sm:$0xf]
      %v252 = vld [vmem:[%s1 + $0x40] sm:$0xf]
      %v253 = vld [vmem:[%s1 + $0x44] sm:$0xf]
      %v254 = vld [vmem:[%s1 + $0x48] sm:$0xf]
      %v255 = vld [vmem:[%s1 + $0x4c] sm:$0xf]
      %v256 = vld [vmem:[%s1 + $0x50] sm:$0xf]
      %v257 = vld [vmem:[%s1 + $0x54] sm:$0xf]
      %v258 = vld [vmem:[%s1 + $0x58] sm:$0xf]
      %v259 = vld [vmem:[%s1 + $0x5c] sm:$0xf]
      %v260 = vld [vmem:[%s1 + $0x60] sm:$0xf]
      %v261 = vld [vmem:[%s1 + $0x64] sm:$0xf]
      %v262 = vld [vmem:[%s1 + $0x68] sm:$0xf]
      %v263 = vld [vmem:[%s1 + $0x6c] sm:$0xf]
      %v264 = vld [vmem:[%s1 + $0x70] sm:$0xf]
      %v265 = vld [vmem:[%s1 + $0x74] sm:$0xf]
      %v266 = vld [vmem:[%s1 + $0x78] sm:$0xf]
      %v267 = vld [vmem:[%s1 + $0x7c] sm:$0xf]
      %v268 = vld [vmem:[%s1 + $0x80] sm:$0xf]
      %v269 = vld [vmem:[%s1 + $0x84] sm:$0xf]
      %v282 = vunpack.c.l.b16 %v224
      %v283 = vunpack.c.h.b16 %v224
      %v284 = vunpack.c.l.b16 %v225
      %v285 = vunpack.c.l.b16 %v226
      %v286 = vunpack.c.h.b16 %v226
      %v287 = vunpack.c.l.b16 %v227
      %v288 = vunpack.c.l.b16 %v228
      %v289 = vunpack.c.h.b16 %v228
      %v290 = vunpack.c.l.b16 %v229
      %v291 = vunpack.c.l.b16 %v230
      %v292 = vunpack.c.h.b16 %v230
      %v293 = vunpack.c.l.b16 %v231
      %v294 = vunpack.c.l.b16 %v232
      %v295 = vunpack.c.h.b16 %v232
      %v296 = vunpack.c.l.b16 %v233
      %v297 = vunpack.c.l.b16 %v234
      %v298 = vunpack.c.h.b16 %v234
      %v299 = vunpack.c.l.b16 %v235
      %v300 = vpack.c.b16 %v285, %v282
      %v301 = vpack.c.b16 %v286, %v283
      %v302 = vpack.c.b16 %v287, %v284
      %v303 = vpack.c.b16 %v291, %v288
      %v304 = vpack.c.b16 %v292, %v289
      %v305 = vpack.c.b16 %v293, %v290
      %v306 = vpack.c.b16 %v297, %v294
      %v307 = vpack.c.b16 %v298, %v295
      %v308 = vpack.c.b16 %v299, %v296
      %v349 = vunpack.c.l.b16 %v236
      %v350 = vunpack.c.l.b16 %v237
      %v351 = vunpack.c.l.b16 %v238
      %v352 = vunpack.c.l.b16 %v239
      %v353 = vunpack.c.l.b16 %v240
      %v354 = vunpack.c.l.b16 %v241
      %v355 = vunpack.c.l.b16 %v242
      %v356 = vunpack.c.l.b16 %v243
      %v357 = vunpack.c.l.b16 %v244
      %v358 = vunpack.c.l.b16 %v245
      %v359 = vunpack.c.l.b16 %v246
      %v360 = vunpack.c.l.b16 %v247
      %v361 = vunpack.c.l.b16 %v248
      %v362 = vunpack.c.l.b16 %v249
      %v363 = vunpack.c.l.b16 %v250
      %v364 = vunpack.c.l.b16 %v251
      %v365 = vunpack.c.l.b16 %v252
      %v366 = vunpack.c.l.b16 %v253
      %v367 = vunpack.c.l.b16 %v254
      %v368 = vunpack.c.l.b16 %v255
      %v369 = vunpack.c.l.b16 %v256
      %v370 = vunpack.c.l.b16 %v257
      %v371 = vunpack.c.l.b16 %v258
      %v372 = vunpack.c.l.b16 %v259
      %v373 = vunpack.c.l.b16 %v260
      %v374 = vunpack.c.l.b16 %v261
      %v375 = vunpack.c.l.b16 %v262
      %v376 = vunpack.c.l.b16 %v263
      %v377 = vunpack.c.l.b16 %v264
      %v378 = vunpack.c.l.b16 %v265
      %v379 = vunpack.c.l.b16 %v266
      %v380 = vunpack.c.l.b16 %v267
      %v381 = vunpack.c.l.b16 %v268
      %v382 = vunpack.c.l.b16 %v269
      %v383 = vpack.c.b16 %v350, %v349
      %v384 = vpack.c.b16 %v352, %v351
      %v385 = vpack.c.b16 %v354, %v353
      %v386 = vpack.c.b16 %v356, %v355
      %v387 = vpack.c.b16 %v358, %v357
      %v388 = vpack.c.b16 %v360, %v359
      %v389 = vpack.c.b16 %v362, %v361
      %v390 = vpack.c.b16 %v364, %v363
      %v391 = vpack.c.b16 %v366, %v365
      %v392 = vpack.c.b16 %v368, %v367
      %v393 = vpack.c.b16 %v370, %v369
      %v394 = vpack.c.b16 %v372, %v371
      %v395 = vpack.c.b16 %v374, %v373
      %v396 = vpack.c.b16 %v376, %v375
      %v397 = vpack.c.b16 %v378, %v377
      %v398 = vpack.c.b16 %v380, %v379
      %v399 = vpack.c.b16 %v382, %v381
      %vm417 = vcmask 130048
      %v419 = vsel %vm417, %v302, 0
      %v422 = vsel %vm417, %v305, 0
      %v425 = vsel %vm417, %v308, 0
      %427 = vmatprep.subr.bf16.mxu0 0
      %428 = vmatpush1.bf16.msra.mxu0 %v390
      %429 = vmatprep.subr.bf16.mxu0 0
      %430 = vmatpush1.bf16.msra.mxu0 %v389
      %431 = vmatprep.subr.bf16.mxu0 0
      %432 = vmatpush1.bf16.msra.mxu0 %v388
      %433 = vmatprep.subr.bf16.mxu0 0
      %434 = vmatpush1.bf16.msra.mxu0 %v387
      %435 = vmatprep.subr.bf16.mxu0 0
      %436 = vmatpush1.bf16.msra.mxu0 %v386
      %437 = vmatprep.subr.bf16.mxu0 0
      %438 = vmatpush1.bf16.msra.mxu0 %v385
      %439 = vmatprep.subr.bf16.mxu0 0
      %440 = vmatpush1.bf16.msra.mxu0 %v384
      %441 = vmatprep.subr.bf16.mxu0 0
      %442 = vmatpush1.bf16.msra.mxu0 %v383
      %443 = vmatprep.subr.bf16.mxu0 0
      %444 = vmatpush2.bf16.msra.mxu0 %v398
      %445 = vmatprep.subr.bf16.mxu0 0
      %446 = vmatpush2.bf16.msra.mxu0 %v397
      %447 = vmatprep.subr.bf16.mxu0 0
      %448 = vmatpush2.bf16.msra.mxu0 %v396
      %449 = vmatprep.subr.bf16.mxu0 0
      %450 = vmatpush2.bf16.msra.mxu0 %v395
      %451 = vmatprep.subr.bf16.mxu0 0
      %452 = vmatpush2.bf16.msra.mxu0 %v394
      %453 = vmatprep.subr.bf16.mxu0 0
      %454 = vmatpush2.bf16.msra.mxu0 %v393
      %455 = vmatprep.subr.bf16.mxu0 0
      %456 = vmatpush2.bf16.msra.mxu0 %v392
      %457 = vmatprep.subr.bf16.mxu0 0
      %458 = vmatpush2.bf16.msra.mxu0 %v391
      %459 = vmatprep.mubr.bf16.mxu0 %v301
      %460 = vmatmul.mubr.bf16.gmra.mxu0 %v300
      %v461 = vpop.f32.mrf.mxu0
      %v462 = vadd.f32 0.0, %v461
      %v463 = vpop.f32.mrf.mxu0
      %v464 = vpop.f32.mrf.mxu0
      %v465 = vadd.f32 0.0, %v464
      %v466 = vpop.f32.mrf.mxu0
      %467 = vmatprep.mubr.bf16.mxu0 %v304
      %468 = vmatmul.mubr.bf16.gmra.mxu0 %v303
      %v469 = vpop.f32.mrf.mxu0
      %v470 = vadd.f32 0.0, %v469
      %v471 = vpop.f32.mrf.mxu0
      %v472 = vpop.f32.mrf.mxu0
      %v473 = vadd.f32 0.0, %v472
      %v474 = vpop.f32.mrf.mxu0
      %475 = vmatprep.mubr.bf16.mxu0 %v307
      %476 = vmatmul.mubr.bf16.gmra.mxu0 %v306
      %v477 = vpop.f32.mrf.mxu0
      %v478 = vadd.f32 0.0, %v477
      %v479 = vpop.f32.mrf.mxu0
      %v480 = vpop.f32.mrf.mxu0
      %v481 = vadd.f32 0.0, %v480
      %v482 = vpop.f32.mrf.mxu0
      %483 = vdwg.mxu0
      %484 = vmatprep.subr.bf16.mxu0 0
      %485 = vmatpush1.bf16.msra.mxu0 0
      %486 = vmatprep.subr.bf16.mxu0 0
      %487 = vmatpush1.bf16.msra.mxu0 0
      %488 = vmatprep.subr.bf16.mxu0 0
      %489 = vmatpush1.bf16.msra.mxu0 0
      %490 = vmatprep.subr.bf16.mxu0 0
      %491 = vmatpush1.bf16.msra.mxu0 0
      %492 = vmatprep.subr.bf16.mxu0 0
      %493 = vmatpush1.bf16.msra.mxu0 0
      %494 = vmatprep.subr.bf16.mxu0 0
      %495 = vmatpush1.bf16.msra.mxu0 0
      %496 = vmatprep.subr.bf16.mxu0 0
      %497 = vmatpush1.bf16.msra.mxu0 0
      %498 = vmatprep.subr.bf16.mxu0 0
      %499 = vmatpush1.bf16.msra.mxu0 %v399
      %500 = vmatprep.subr.bf16.mxu0 0
      %501 = vmatpush2.bf16.msra.mxu0 0
      %502 = vmatprep.subr.bf16.mxu0 0
      %503 = vmatpush2.bf16.msra.mxu0 0
      %504 = vmatprep.subr.bf16.mxu0 0
      %505 = vmatpush2.bf16.msra.mxu0 0
      %506 = vmatprep.subr.bf16.mxu0 0
      %507 = vmatpush2.bf16.msra.mxu0 0
      %508 = vmatprep.subr.bf16.mxu0 0
      %509 = vmatpush2.bf16.msra.mxu0 0
      %510 = vmatprep.subr.bf16.mxu0 0
      %511 = vmatpush2.bf16.msra.mxu0 0
      %512 = vmatprep.subr.bf16.mxu0 0
      %513 = vmatpush2.bf16.msra.mxu0 0
      %514 = vmatprep.subr.bf16.mxu0 0
      %515 = vmatpush2.bf16.msra.mxu0 0
      %516 = vmatprep.mubr.bf16.mxu0 0
      %517 = vmatmul.mubr.bf16.gmra.mxu0 %v419
      %v518 = vpop.f32.mrf.mxu0
      %v519 = vadd.f32 %v462, %v518
      %v520 = vpop.f32.mrf.mxu0
      %v521 = vpop.f32.mrf.mxu0
      %v522 = vadd.f32 %v465, %v521
      %v523 = vpop.f32.mrf.mxu0
      %524 = vmatprep.mubr.bf16.mxu0 0
      %525 = vmatmul.mubr.bf16.gmra.mxu0 %v422
      %v526 = vpop.f32.mrf.mxu0
      %v527 = vadd.f32 %v470, %v526
      %v528 = vpop.f32.mrf.mxu0
      %v529 = vpop.f32.mrf.mxu0
      %v530 = vadd.f32 %v473, %v529
      %v531 = vpop.f32.mrf.mxu0
      %532 = vmatprep.mubr.bf16.mxu0 0
      %533 = vmatmul.mubr.bf16.gmra.mxu0 %v425
      %v534 = vpop.f32.mrf.mxu0
      %v535 = vadd.f32 %v478, %v534
      %v536 = vpop.f32.mrf.mxu0
      %v537 = vpop.f32.mrf.mxu0
      %v538 = vadd.f32 %v481, %v537
      %v539 = vpop.f32.mrf.mxu0
      %540 = vdwg.mxu0
      %vm541 = vcmp.gt.f32.partialorder %v519, 0.0
      %vm542 = vcmp.gt.f32.partialorder %v522, 0.0
      %vm543 = vcmp.gt.f32.partialorder %v527, 0.0
      %vm544 = vcmp.gt.f32.partialorder %v530, 0.0
      %vm545 = vcmp.gt.f32.partialorder %v535, 0.0
      %vm546 = vcmp.gt.f32.partialorder %v538, 0.0
      %v547 = vmul.f32 %v519, 0.01
      %v548 = vmul.f32 %v522, 0.01
      %v549 = vmul.f32 %v527, 0.01
      %v550 = vmul.f32 %v530, 0.01
      %v551 = vmul.f32 %v535, 0.01
      %v552 = vmul.f32 %v538, 0.01
      %v553 = vsel %vm541, %v519, %v547
      %v554 = vsel %vm542, %v522, %v548
      %v555 = vsel %vm543, %v527, %v549
      %v556 = vsel %vm544, %v530, %v550
      %v557 = vsel %vm545, %v535, %v551
      %v558 = vsel %vm546, %v538, %v552
      %v559 = vpack.c.bf16 %v554, %v553
      %v560 = vpack.c.bf16 %v556, %v555
      %v561 = vpack.c.bf16 %v557, %v557
      %v562 = vld [vmem:[%s2] sm:$0xff]
      %v563 = vld [vmem:[%s2 + $0x8] sm:$0xff]
      %v564 = vld [vmem:[%s2 + $0x10] sm:$0xff]
      %v565 = vld [vmem:[%s2 + $0x18] sm:$0xff]
      %v566 = vld [vmem:[%s2 + $0x20] sm:$0xff]
      %v567 = vld [vmem:[%s2 + $0x28] sm:$0xff]
      %v568 = vld [vmem:[%s2 + $0x30] sm:$0xff]
      %v569 = vld [vmem:[%s2 + $0x38] sm:$0xff]
      %v570 = vld [vmem:[%s2 + $0x40] sm:$0x33]
      %s571 = scalar_lea.vmem %s2, 72
      %v572 = vld [vmem:[%s571] sm:$0xff]
      %v573 = vld [vmem:[%s571 + $0x8] sm:$0xff]
      %v574 = vld [vmem:[%s571 + $0x10] sm:$0xff]
      %v575 = vld [vmem:[%s571 + $0x18] sm:$0xff]
      %v576 = vld [vmem:[%s571 + $0x20] sm:$0xff]
      %v577 = vld [vmem:[%s571 + $0x28] sm:$0xff]
      %v578 = vld [vmem:[%s571 + $0x30] sm:$0xff]
      %v579 = vld [vmem:[%s571 + $0x38] sm:$0xff]
      %v580 = vld [vmem:[%s571 + $0x40] sm:$0x33]
      %vm581 = vsmask.f32 7424
      %v583 = vshrl.u32 %v559, 16
      %v585 = vshll.u32 %v559, 16
      %v587 = vrot.slane %v585, 1
      %v588 = vor.u32 %v583, %v587
      %v590 = vshll.u32 %v560, 16
      %v592 = vrot.slane %v590, 1
      %v593 = vsel %vm581, %v588, %v592
      %v594 = vshrl.u32 %v560, 16
      %v596 = vor.u32 %v594, %v592
      %v598 = vshll.u32 %v561, 16
      %v600 = vrot.slane %v598, 1
      %v601 = vsel %vm581, %v596, %v600
      %v602 = vshrl.u32 %v561, 16
      %v604 = vor.u32 %v602, %v600
      %v614 = vunpack.c.l.b16 %v572
      %v615 = vunpack.c.h.b16 %v572
      %v616 = vunpack.c.l.b16 %v573
      %v617 = vunpack.c.h.b16 %v573
      %v618 = vunpack.c.l.b16 %v574
      %v619 = vunpack.c.h.b16 %v574
      %v620 = vunpack.c.l.b16 %v575
      %v621 = vunpack.c.h.b16 %v575
      %v622 = vunpack.c.l.b16 %v576
      %v623 = vunpack.c.h.b16 %v576
      %v624 = vunpack.c.l.b16 %v577
      %v625 = vunpack.c.h.b16 %v577
      %v626 = vunpack.c.l.b16 %v578
      %v627 = vunpack.c.h.b16 %v578
      %v628 = vunpack.c.l.b16 %v579
      %v629 = vunpack.c.h.b16 %v579
      %v630 = vunpack.c.l.b16 %v580
      %v631 = vunpack.c.h.b16 %v580
      %v632 = vpack.c.b16 %v616, %v614
      %v633 = vpack.c.b16 %v617, %v615
      %v634 = vpack.c.b16 %v620, %v618
      %v635 = vpack.c.b16 %v621, %v619
      %v636 = vpack.c.b16 %v624, %v622
      %v637 = vpack.c.b16 %v625, %v623
      %v638 = vpack.c.b16 %v628, %v626
      %v639 = vpack.c.b16 %v629, %v627
      %v640 = vpack.c.b16 %v630, %v630
      %v641 = vpack.c.b16 %v631, %v631
      %vm650 = vcmask 556032
      %v652 = vsel %vm650, %v593, 0
      %v655 = vsel %vm650, %v601, 0
      %v658 = vsel %vm650, %v604, 0
      %vm660 = vcmask 1041408
      %v662 = vsel %vm660, %v640, 0
      %v665 = vsel %vm660, %v641, 0
      %667 = vmatprep.subr.bf16.mxu0 0
      %668 = vmatpush1.bf16.msra.mxu0 0
      %669 = vmatprep.subr.bf16.mxu0 0
      %670 = vmatpush1.bf16.msra.mxu0 0
      %671 = vmatprep.subr.bf16.mxu0 0
      %672 = vmatpush1.bf16.msra.mxu0 0
      %673 = vmatprep.subr.bf16.mxu0 %v665
      %674 = vmatpush1.bf16.msra.mxu0 %v662
      %675 = vmatprep.subr.bf16.mxu0 %v639
      %676 = vmatpush1.bf16.msra.mxu0 %v638
      %677 = vmatprep.subr.bf16.mxu0 %v637
      %678 = vmatpush1.bf16.msra.mxu0 %v636
      %679 = vmatprep.subr.bf16.mxu0 %v635
      %680 = vmatpush1.bf16.msra.mxu0 %v634
      %681 = vmatprep.subr.bf16.mxu0 %v633
      %682 = vmatpush1.bf16.msra.mxu0 %v632
      %683 = vmatprep.subr.bf16.mxu0 0
      %684 = vmatpush2.bf16.msra.mxu0 0
      %685 = vmatprep.subr.bf16.mxu0 0
      %686 = vmatpush2.bf16.msra.mxu0 0
      %687 = vmatprep.subr.bf16.mxu0 0
      %688 = vmatpush2.bf16.msra.mxu0 0
      %689 = vmatprep.subr.bf16.mxu0 0
      %690 = vmatpush2.bf16.msra.mxu0 0
      %691 = vmatprep.subr.bf16.mxu0 0
      %692 = vmatpush2.bf16.msra.mxu0 0
      %693 = vmatprep.subr.bf16.mxu0 0
      %694 = vmatpush2.bf16.msra.mxu0 0
      %695 = vmatprep.subr.bf16.mxu0 0
      %696 = vmatpush2.bf16.msra.mxu0 0
      %697 = vmatprep.subr.bf16.mxu0 0
      %698 = vmatpush2.bf16.msra.mxu0 0
      %699 = vmatprep.mubr.bf16.mxu0 0
      %700 = vmatmul.mubr.bf16.gmra.mxu0 %v652
      %v701 = vpop.f32.mrf.mxu0
      %v702 = vadd.f32 0.0, %v701
      %v703 = vpop.f32.mrf.mxu0
      %v704 = vadd.f32 0.0, %v703
      %v705 = vpop.f32.mrf.mxu0
      %v706 = vadd.f32 0.0, %v705
      %v707 = vpop.f32.mrf.mxu0
      %v708 = vadd.f32 0.0, %v707
      %709 = vmatprep.mubr.bf16.mxu0 0
      %710 = vmatmul.mubr.bf16.gmra.mxu0 %v655
      %v711 = vpop.f32.mrf.mxu0
      %v712 = vadd.f32 0.0, %v711
      %v713 = vpop.f32.mrf.mxu0
      %v714 = vadd.f32 0.0, %v713
      %v715 = vpop.f32.mrf.mxu0
      %v716 = vadd.f32 0.0, %v715
      %v717 = vpop.f32.mrf.mxu0
      %v718 = vadd.f32 0.0, %v717
      %719 = vmatprep.mubr.bf16.mxu0 0
      %720 = vmatmul.mubr.bf16.gmra.mxu0 %v658
      %v721 = vpop.f32.mrf.mxu0
      %v722 = vadd.f32 0.0, %v721
      %v723 = vpop.f32.mrf.mxu0
      %v724 = vadd.f32 0.0, %v723
      %v725 = vpop.f32.mrf.mxu0
      %v726 = vpop.f32.mrf.mxu0
      %727 = vdwg.mxu0
      %v737 = vunpack.c.l.b16 %v562
      %v738 = vunpack.c.h.b16 %v562
      %v739 = vunpack.c.l.b16 %v563
      %v740 = vunpack.c.h.b16 %v563
      %v741 = vunpack.c.l.b16 %v564
      %v742 = vunpack.c.h.b16 %v564
      %v743 = vunpack.c.l.b16 %v565
      %v744 = vunpack.c.h.b16 %v565
      %v745 = vunpack.c.l.b16 %v566
      %v746 = vunpack.c.h.b16 %v566
      %v747 = vunpack.c.l.b16 %v567
      %v748 = vunpack.c.h.b16 %v567
      %v749 = vunpack.c.l.b16 %v568
      %v750 = vunpack.c.h.b16 %v568
      %v751 = vunpack.c.l.b16 %v569
      %v752 = vunpack.c.h.b16 %v569
      %v753 = vunpack.c.l.b16 %v570
      %v754 = vunpack.c.h.b16 %v570
      %v755 = vpack.c.b16 %v739, %v737
      %v756 = vpack.c.b16 %v740, %v738
      %v757 = vpack.c.b16 %v743, %v741
      %v758 = vpack.c.b16 %v744, %v742
      %v759 = vpack.c.b16 %v747, %v745
      %v760 = vpack.c.b16 %v748, %v746
      %v761 = vpack.c.b16 %v751, %v749
      %v762 = vpack.c.b16 %v752, %v750
      %v763 = vpack.c.b16 %v753, %v753
      %v764 = vpack.c.b16 %v754, %v754
      %v773 = vsel %vm650, %v559, 0
      %v775 = vsel %vm650, %v560, 0
      %v777 = vsel %vm650, %v561, 0
      %v780 = vsel %vm660, %v763, 0
      %v783 = vsel %vm660, %v764, 0
      %785 = vmatprep.subr.bf16.mxu0 0
      %786 = vmatpush1.bf16.msra.mxu0 0
      %787 = vmatprep.subr.bf16.mxu0 0
      %788 = vmatpush1.bf16.msra.mxu0 0
      %789 = vmatprep.subr.bf16.mxu0 0
      %790 = vmatpush1.bf16.msra.mxu0 0
      %791 = vmatprep.subr.bf16.mxu0 %v783
      %792 = vmatpush1.bf16.msra.mxu0 %v780
      %793 = vmatprep.subr.bf16.mxu0 %v762
      %794 = vmatpush1.bf16.msra.mxu0 %v761
      %795 = vmatprep.subr.bf16.mxu0 %v760
      %796 = vmatpush1.bf16.msra.mxu0 %v759
      %797 = vmatprep.subr.bf16.mxu0 %v758
      %798 = vmatpush1.bf16.msra.mxu0 %v757
      %799 = vmatprep.subr.bf16.mxu0 %v756
      %800 = vmatpush1.bf16.msra.mxu0 %v755
      %801 = vmatprep.subr.bf16.mxu0 0
      %802 = vmatpush2.bf16.msra.mxu0 0
      %803 = vmatprep.subr.bf16.mxu0 0
      %804 = vmatpush2.bf16.msra.mxu0 0
      %805 = vmatprep.subr.bf16.mxu0 0
      %806 = vmatpush2.bf16.msra.mxu0 0
      %807 = vmatprep.subr.bf16.mxu0 0
      %808 = vmatpush2.bf16.msra.mxu0 0
      %809 = vmatprep.subr.bf16.mxu0 0
      %810 = vmatpush2.bf16.msra.mxu0 0
      %811 = vmatprep.subr.bf16.mxu0 0
      %812 = vmatpush2.bf16.msra.mxu0 0
      %813 = vmatprep.subr.bf16.mxu0 0
      %814 = vmatpush2.bf16.msra.mxu0 0
      %815 = vmatprep.subr.bf16.mxu0 0
      %816 = vmatpush2.bf16.msra.mxu0 0
      %817 = vmatprep.mubr.bf16.mxu0 0
      %818 = vmatmul.mubr.bf16.gmra.mxu0 %v773
      %v819 = vpop.f32.mrf.mxu0
      %v820 = vadd.f32 %v702, %v819
      %v821 = vpop.f32.mrf.mxu0
      %v822 = vadd.f32 %v704, %v821
      %v823 = vpop.f32.mrf.mxu0
      %v824 = vadd.f32 %v706, %v823
      %v825 = vpop.f32.mrf.mxu0
      %v826 = vadd.f32 %v708, %v825
      %827 = vmatprep.mubr.bf16.mxu0 0
      %828 = vmatmul.mubr.bf16.gmra.mxu0 %v775
      %v829 = vpop.f32.mrf.mxu0
      %v830 = vadd.f32 %v712, %v829
      %v831 = vpop.f32.mrf.mxu0
      %v832 = vadd.f32 %v714, %v831
      %v833 = vpop.f32.mrf.mxu0
      %v834 = vadd.f32 %v716, %v833
      %v835 = vpop.f32.mrf.mxu0
      %v836 = vadd.f32 %v718, %v835
      %837 = vmatprep.mubr.bf16.mxu0 0
      %838 = vmatmul.mubr.bf16.gmra.mxu0 %v777
      %v839 = vpop.f32.mrf.mxu0
      %v840 = vadd.f32 %v722, %v839
      %v841 = vpop.f32.mrf.mxu0
      %v842 = vadd.f32 %v724, %v841
      %v843 = vpop.f32.mrf.mxu0
      %v844 = vpop.f32.mrf.mxu0
      %845 = vdwg.mxu0
      %v846 = vpack.c.bf16 %v558, %v557
      %s847 = scalar_lea.vmem %s2, 144
      %v848 = vld [vmem:[%s847] sm:$0xff]
      %v849 = vld [vmem:[%s847 + $0x8] sm:$0xff]
      %v850 = vld [vmem:[%s847 + $0x10] sm:$0xff]
      %v851 = vld [vmem:[%s847 + $0x18] sm:$0xff]
      %v852 = vld [vmem:[%s847 + $0x20] sm:$0xff]
      %v853 = vld [vmem:[%s847 + $0x28] sm:$0xff]
      %v854 = vld [vmem:[%s847 + $0x30] sm:$0xff]
      %v855 = vld [vmem:[%s847 + $0x38] sm:$0xff]
      %v856 = vld [vmem:[%s847 + $0x40] sm:$0x33]
      %vm860 = vcmask 1044480
      %v861 = vrot.slane %v559, 3
      %v862 = vrot.slane %v560, 3
      %v863 = vsel %vm860, %v861, %v862
      %v864 = vrot.slane %v846, 3
      %v865 = vsel %vm860, %v862, %v864
      %v875 = vunpack.c.l.b16 %v848
      %v876 = vunpack.c.h.b16 %v848
      %v877 = vunpack.c.l.b16 %v849
      %v878 = vunpack.c.h.b16 %v849
      %v879 = vunpack.c.l.b16 %v850
      %v880 = vunpack.c.h.b16 %v850
      %v881 = vunpack.c.l.b16 %v851
      %v882 = vunpack.c.h.b16 %v851
      %v883 = vunpack.c.l.b16 %v852
      %v884 = vunpack.c.h.b16 %v852
      %v885 = vunpack.c.l.b16 %v853
      %v886 = vunpack.c.h.b16 %v853
      %v887 = vunpack.c.l.b16 %v854
      %v888 = vunpack.c.h.b16 %v854
      %v889 = vunpack.c.l.b16 %v855
      %v890 = vunpack.c.h.b16 %v855
      %v891 = vunpack.c.l.b16 %v856
      %v892 = vunpack.c.h.b16 %v856
      %v893 = vpack.c.b16 %v877, %v875
      %v894 = vpack.c.b16 %v878, %v876
      %v895 = vpack.c.b16 %v881, %v879
      %v896 = vpack.c.b16 %v882, %v880
      %v897 = vpack.c.b16 %v885, %v883
      %v898 = vpack.c.b16 %v886, %v884
      %v899 = vpack.c.b16 %v889, %v887
      %v900 = vpack.c.b16 %v890, %v888
      %v901 = vpack.c.b16 %v891, %v891
      %v902 = vpack.c.b16 %v892, %v892
      %v912 = vsel %vm650, %v863, 0
      %v915 = vsel %vm650, %v865, 0
      %v918 = vsel %vm650, %v864, 0
      %v921 = vsel %vm660, %v901, 0
      %v924 = vsel %vm660, %v902, 0
      %926 = vmatprep.subr.bf16.mxu0 0
      %927 = vmatpush1.bf16.msra.mxu0 0
      %928 = vmatprep.subr.bf16.mxu0 0
      %929 = vmatpush1.bf16.msra.mxu0 0
      %930 = vmatprep.subr.bf16.mxu0 0
      %931 = vmatpush1.bf16.msra.mxu0 0
      %932 = vmatprep.subr.bf16.mxu0 %v924
      %933 = vmatpush1.bf16.msra.mxu0 %v921
      %934 = vmatprep.subr.bf16.mxu0 %v900
      %935 = vmatpush1.bf16.msra.mxu0 %v899
      %936 = vmatprep.subr.bf16.mxu0 %v898
      %937 = vmatpush1.bf16.msra.mxu0 %v897
      %938 = vmatprep.subr.bf16.mxu0 %v896
      %939 = vmatpush1.bf16.msra.mxu0 %v895
      %940 = vmatprep.subr.bf16.mxu0 %v894
      %941 = vmatpush1.bf16.msra.mxu0 %v893
      %942 = vmatprep.subr.bf16.mxu0 0
      %943 = vmatpush2.bf16.msra.mxu0 0
      %944 = vmatprep.subr.bf16.mxu0 0
      %945 = vmatpush2.bf16.msra.mxu0 0
      %946 = vmatprep.subr.bf16.mxu0 0
      %947 = vmatpush2.bf16.msra.mxu0 0
      %948 = vmatprep.subr.bf16.mxu0 0
      %949 = vmatpush2.bf16.msra.mxu0 0
      %950 = vmatprep.subr.bf16.mxu0 0
      %951 = vmatpush2.bf16.msra.mxu0 0
      %952 = vmatprep.subr.bf16.mxu0 0
      %953 = vmatpush2.bf16.msra.mxu0 0
      %954 = vmatprep.subr.bf16.mxu0 0
      %955 = vmatpush2.bf16.msra.mxu0 0
      %956 = vmatprep.subr.bf16.mxu0 0
      %957 = vmatpush2.bf16.msra.mxu0 0
      %958 = vmatprep.mubr.bf16.mxu0 0
      %959 = vmatmul.mubr.bf16.gmra.mxu0 %v912
      %v960 = vpop.f32.mrf.mxu0
      %v961 = vadd.f32 0.0, %v960
      %v962 = vpop.f32.mrf.mxu0
      %v963 = vadd.f32 0.0, %v962
      %v964 = vpop.f32.mrf.mxu0
      %v965 = vadd.f32 0.0, %v964
      %v966 = vpop.f32.mrf.mxu0
      %v967 = vadd.f32 0.0, %v966
      %968 = vmatprep.mubr.bf16.mxu0 0
      %969 = vmatmul.mubr.bf16.gmra.mxu0 %v915
      %v970 = vpop.f32.mrf.mxu0
      %v971 = vadd.f32 0.0, %v970
      %v972 = vpop.f32.mrf.mxu0
      %v973 = vadd.f32 0.0, %v972
      %v974 = vpop.f32.mrf.mxu0
      %v975 = vadd.f32 0.0, %v974
      %v976 = vpop.f32.mrf.mxu0
      %v977 = vadd.f32 0.0, %v976
      %978 = vmatprep.mubr.bf16.mxu0 0
      %979 = vmatmul.mubr.bf16.gmra.mxu0 %v918
      %v980 = vpop.f32.mrf.mxu0
      %v981 = vadd.f32 0.0, %v980
      %v982 = vpop.f32.mrf.mxu0
      %v983 = vadd.f32 0.0, %v982
      %v984 = vpop.f32.mrf.mxu0
      %v985 = vpop.f32.mrf.mxu0
      %986 = vdwg.mxu0
      %v987 = vadd.f32 %v820, %v961
      %v988 = vadd.f32 %v822, %v963
      %v989 = vadd.f32 %v824, %v965
      %v990 = vadd.f32 %v826, %v967
      %v991 = vadd.f32 %v830, %v971
      %v992 = vadd.f32 %v832, %v973
      %v993 = vadd.f32 %v834, %v975
      %v994 = vadd.f32 %v836, %v977
      %v995 = vadd.f32 %v840, %v981
      %v996 = vadd.f32 %v842, %v983
      %s997 = scalar_lea.vmem %s2, 216
      %v998 = vld [vmem:[%s997] sm:$0xff]
      %v999 = vld [vmem:[%s997 + $0x8] sm:$0xff]
      %v1000 = vld [vmem:[%s997 + $0x10] sm:$0xff]
      %v1001 = vld [vmem:[%s997 + $0x18] sm:$0xff]
      %v1002 = vld [vmem:[%s997 + $0x20] sm:$0xff]
      %v1003 = vld [vmem:[%s997 + $0x28] sm:$0xff]
      %v1004 = vld [vmem:[%s997 + $0x30] sm:$0xff]
      %v1005 = vld [vmem:[%s997 + $0x38] sm:$0xff]
      %v1006 = vld [vmem:[%s997 + $0x40] sm:$0x33]
      %vm1007 = vsmask.f32 4352
      %v1008 = vrot.slane %v583, 3
      %v1009 = vrot.slane %v585, 4
      %v1010 = vor.u32 %v1008, %v1009
      %v1011 = vrot.slane %v594, 3
      %v1012 = vrot.slane %v590, 4
      %v1013 = vor.u32 %v1011, %v1012
      %v1014 = vsel %vm1007, %v1010, %v1013
      %v1016 = vshrl.u32 %v846, 16
      %v1018 = vrot.slane %v1016, 3
      %v1019 = vshll.u32 %v846, 16
      %v1021 = vrot.slane %v1019, 4
      %v1022 = vor.u32 %v1018, %v1021
      %v1023 = vsel %vm1007, %v1013, %v1022
      %v1033 = vunpack.c.l.b16 %v998
      %v1034 = vunpack.c.h.b16 %v998
      %v1035 = vunpack.c.l.b16 %v999
      %v1036 = vunpack.c.h.b16 %v999
      %v1037 = vunpack.c.l.b16 %v1000
      %v1038 = vunpack.c.h.b16 %v1000
      %v1039 = vunpack.c.l.b16 %v1001
      %v1040 = vunpack.c.h.b16 %v1001
      %v1041 = vunpack.c.l.b16 %v1002
      %v1042 = vunpack.c.h.b16 %v1002
      %v1043 = vunpack.c.l.b16 %v1003
      %v1044 = vunpack.c.h.b16 %v1003
      %v1045 = vunpack.c.l.b16 %v1004
      %v1046 = vunpack.c.h.b16 %v1004
      %v1047 = vunpack.c.l.b16 %v1005
      %v1048 = vunpack.c.h.b16 %v1005
      %v1049 = vunpack.c.l.b16 %v1006
      %v1050 = vunpack.c.h.b16 %v1006
      %v1051 = vpack.c.b16 %v1035, %v1033
      %v1052 = vpack.c.b16 %v1036, %v1034
      %v1053 = vpack.c.b16 %v1039, %v1037
      %v1054 = vpack.c.b16 %v1040, %v1038
      %v1055 = vpack.c.b16 %v1043, %v1041
      %v1056 = vpack.c.b16 %v1044, %v1042
      %v1057 = vpack.c.b16 %v1047, %v1045
      %v1058 = vpack.c.b16 %v1048, %v1046
      %v1059 = vpack.c.b16 %v1049, %v1049
      %v1060 = vpack.c.b16 %v1050, %v1050
      %v1070 = vsel %vm650, %v1014, 0
      %v1073 = vsel %vm650, %v1023, 0
      %v1076 = vsel %vm650, %v1022, 0
      %v1079 = vsel %vm660, %v1059, 0
      %v1082 = vsel %vm660, %v1060, 0
      %1084 = vmatprep.subr.bf16.mxu0 0
      %1085 = vmatpush1.bf16.msra.mxu0 0
      %1086 = vmatprep.subr.bf16.mxu0 0
      %1087 = vmatpush1.bf16.msra.mxu0 0
      %1088 = vmatprep.subr.bf16.mxu0 0
      %1089 = vmatpush1.bf16.msra.mxu0 0
      %1090 = vmatprep.subr.bf16.mxu0 %v1082
      %1091 = vmatpush1.bf16.msra.mxu0 %v1079
      %1092 = vmatprep.subr.bf16.mxu0 %v1058
      %1093 = vmatpush1.bf16.msra.mxu0 %v1057
      %1094 = vmatprep.subr.bf16.mxu0 %v1056
      %1095 = vmatpush1.bf16.msra.mxu0 %v1055
      %1096 = vmatprep.subr.bf16.mxu0 %v1054
      %1097 = vmatpush1.bf16.msra.mxu0 %v1053
      %1098 = vmatprep.subr.bf16.mxu0 %v1052
      %1099 = vmatpush1.bf16.msra.mxu0 %v1051
      %1100 = vmatprep.subr.bf16.mxu0 0
      %1101 = vmatpush2.bf16.msra.mxu0 0
      %1102 = vmatprep.subr.bf16.mxu0 0
      %1103 = vmatpush2.bf16.msra.mxu0 0
      %1104 = vmatprep.subr.bf16.mxu0 0
      %1105 = vmatpush2.bf16.msra.mxu0 0
      %1106 = vmatprep.subr.bf16.mxu0 0
      %1107 = vmatpush2.bf16.msra.mxu0 0
      %1108 = vmatprep.subr.bf16.mxu0 0
      %1109 = vmatpush2.bf16.msra.mxu0 0
      %1110 = vmatprep.subr.bf16.mxu0 0
      %1111 = vmatpush2.bf16.msra.mxu0 0
      %1112 = vmatprep.subr.bf16.mxu0 0
      %1113 = vmatpush2.bf16.msra.mxu0 0
      %1114 = vmatprep.subr.bf16.mxu0 0
      %1115 = vmatpush2.bf16.msra.mxu0 0
      %1116 = vmatprep.mubr.bf16.mxu0 0
      %1117 = vmatmul.mubr.bf16.gmra.mxu0 %v1070
      %v1118 = vpop.f32.mrf.mxu0
      %v1119 = vadd.f32 0.0, %v1118
      %v1120 = vpop.f32.mrf.mxu0
      %v1121 = vadd.f32 0.0, %v1120
      %v1122 = vpop.f32.mrf.mxu0
      %v1123 = vadd.f32 0.0, %v1122
      %v1124 = vpop.f32.mrf.mxu0
      %v1125 = vadd.f32 0.0, %v1124
      %1126 = vmatprep.mubr.bf16.mxu0 0
      %1127 = vmatmul.mubr.bf16.gmra.mxu0 %v1073
      %v1128 = vpop.f32.mrf.mxu0
      %v1129 = vadd.f32 0.0, %v1128
      %v1130 = vpop.f32.mrf.mxu0
      %v1131 = vadd.f32 0.0, %v1130
      %v1132 = vpop.f32.mrf.mxu0
      %v1133 = vadd.f32 0.0, %v1132
      %v1134 = vpop.f32.mrf.mxu0
      %v1135 = vadd.f32 0.0, %v1134
      %1136 = vmatprep.mubr.bf16.mxu0 0
      %1137 = vmatmul.mubr.bf16.gmra.mxu0 %v1076
      %v1138 = vpop.f32.mrf.mxu0
      %v1139 = vadd.f32 0.0, %v1138
      %v1140 = vpop.f32.mrf.mxu0
      %v1141 = vadd.f32 0.0, %v1140
      %v1142 = vpop.f32.mrf.mxu0
      %v1143 = vpop.f32.mrf.mxu0
      %1144 = vdwg.mxu0
      %v1145 = vadd.f32 %v987, %v1119
      %v1146 = vadd.f32 %v988, %v1121
      %v1147 = vadd.f32 %v989, %v1123
      %v1148 = vadd.f32 %v990, %v1125
      %v1149 = vadd.f32 %v991, %v1129
      %v1150 = vadd.f32 %v992, %v1131
      %v1151 = vadd.f32 %v993, %v1133
      %v1152 = vadd.f32 %v994, %v1135
      %v1153 = vadd.f32 %v995, %v1139
      %v1154 = vadd.f32 %v996, %v1141
      %vm1155 = vcmp.gt.f32.partialorder %v1145, 0.0
      %vm1156 = vcmp.gt.f32.partialorder %v1146, 0.0
      %vm1157 = vcmp.gt.f32.partialorder %v1147, 0.0
      %vm1158 = vcmp.gt.f32.partialorder %v1148, 0.0
      %vm1159 = vcmp.gt.f32.partialorder %v1149, 0.0
      %vm1160 = vcmp.gt.f32.partialorder %v1150, 0.0
      %vm1161 = vcmp.gt.f32.partialorder %v1151, 0.0
      %vm1162 = vcmp.gt.f32.partialorder %v1152, 0.0
      %vm1163 = vcmp.gt.f32.partialorder %v1153, 0.0
      %vm1164 = vcmp.gt.f32.partialorder %v1154, 0.0
      %v1165 = vmul.f32 %v1145, 0.01
      %v1166 = vmul.f32 %v1146, 0.01
      %v1167 = vmul.f32 %v1147, 0.01
      %v1168 = vmul.f32 %v1148, 0.01
      %v1169 = vmul.f32 %v1149, 0.01
      %v1170 = vmul.f32 %v1150, 0.01
      %v1171 = vmul.f32 %v1151, 0.01
      %v1172 = vmul.f32 %v1152, 0.01
      %v1173 = vmul.f32 %v1153, 0.01
      %v1174 = vmul.f32 %v1154, 0.01
      %v1175 = vsel %vm1155, %v1145, %v1165
      %v1176 = vsel %vm1156, %v1146, %v1166
      %v1177 = vsel %vm1157, %v1147, %v1167
      %v1178 = vsel %vm1158, %v1148, %v1168
      %v1179 = vsel %vm1159, %v1149, %v1169
      %v1180 = vsel %vm1160, %v1150, %v1170
      %v1181 = vsel %vm1161, %v1151, %v1171
      %v1182 = vsel %vm1162, %v1152, %v1172
      %v1183 = vsel %vm1163, %v1153, %v1173
      %v1184 = vsel %vm1164, %v1154, %v1174
      %v1185 = vld [vmem:[%s3] sm:$0xff]
      %v1186 = vld [vmem:[%s3 + $0x8] sm:$0xff]
      %v1187 = vld [vmem:[%s3 + $0x10] sm:$0xff]
      %v1188 = vld [vmem:[%s3 + $0x18] sm:$0xff]
      %v1189 = vld [vmem:[%s3 + $0x20] sm:$0xff]
      %v1190 = vld [vmem:[%s3 + $0x28] sm:$0xff]
      %v1191 = vld [vmem:[%s3 + $0x30] sm:$0xff]
      %v1192 = vld [vmem:[%s3 + $0x38] sm:$0xff]
      %v1193 = vld [vmem:[%s3 + $0x40] sm:$0x7]
      %v1194 = vld [vmem:[%s3 + $0x48] sm:$0x7]
      %v1195 = vmul.f32 %v1175, %v1185
      %v1196 = vmul.f32 %v1176, %v1186
      %v1197 = vmul.f32 %v1177, %v1187
      %v1198 = vmul.f32 %v1178, %v1188
      %v1199 = vmul.f32 %v1179, %v1189
      %v1200 = vmul.f32 %v1180, %v1190
      %v1201 = vmul.f32 %v1181, %v1191
      %v1202 = vmul.f32 %v1182, %v1192
      %v1203 = vmul.f32 %v1183, %v1193
      %v1204 = vmul.f32 %v1184, %v1194
      %vm1205 = vcmask 64512
      %v1206 = vsel %vm1205, %v1196, 0.0
      %v1207 = vadd.f32 %v1195, %v1206
      %1208 = vadd.xlane.f32.xlu0 %v1207
      %v1209 = vpop.xlane.xlu0 %1208
      %v1210 = vsel %vm1205, %v1198, 0.0
      %v1211 = vadd.f32 %v1197, %v1210
      %1212 = vadd.xlane.f32.xlu0 %v1211
      %v1213 = vpop.xlane.xlu0 %1212
      %v1214 = vsel %vm1205, %v1200, 0.0
      %v1215 = vadd.f32 %v1199, %v1214
      %1216 = vadd.xlane.f32.xlu0 %v1215
      %v1217 = vpop.xlane.xlu0 %1216
      %v1218 = vsel %vm1205, %v1202, 0.0
      %v1219 = vadd.f32 %v1201, %v1218
      %1220 = vadd.xlane.f32.xlu0 %v1219
      %v1221 = vpop.xlane.xlu0 %1220
      %vm1222 = vcmask 1042432
      %v1223 = vsel %vm1222, %v1203, 0.0
      %vm1224 = vcmask 59392
      %v1225 = vsel %vm1224, %v1204, 0.0
      %v1226 = vadd.f32 %v1223, %v1225
      %1227 = vadd.xlane.f32.xlu0 %v1226
      %v1228 = vpop.xlane.xlu0 %1227
      %v1229 = vadd.f32 %v1209, %v1213
      %v1230 = vadd.f32 %v1229, %v1217
      %v1231 = vadd.f32 %v1230, %v1221
      %v1232 = vsel %vm1222, %v1228, 0.0
      %v1233 = vadd.f32 %v1231, %v1232
      %v1234 = vrot.slane %v1233, 4
      %v1235 = vadd.f32 %v1233, %v1234
      %v1236 = vrot.slane %v1235, 2
      %v1237 = vadd.f32 %v1235, %v1236
      %v1238 = vrot.slane %v1237, 1
      %v1239 = vadd.f32 %v1237, %v1238
      %v1240 = vld [vmem:[#allocation2] sm:$0x1]
      %v1241 = vadd.f32 %v1239, %v1240
      %v1242 = vsub.f32 0.0, %v1241
      %v1243 = vmul.f32 %v1242, 1.442695
      %v1244 = vpow.pop %v1243
      %v1245 = vadd.f32 %v1244, 1.0
      %v1246 = vrcp.pop %v1245
      %v1247 = vmul.f32 1.0, %v1246
      %1249 = vset.pattern.permute.xlu0 0
      %1250 = vperm.xlu0 %1249, %v1247
      %v1251 = vpop.permute.xlu0 %1250
      %v1253 = vlaneseq
      %v1254 = vshrl.u32 %v1253, 7
      %v1255 = vsub.s32 0, %v1254
      %v1256 = vrot.slane %v1251, %v1255
      %1257 = vst [vmem:[%s222] sm:$0x1] %v1256
      %p1258 = scmp.lt.s32.totalorder %s18, 1
      %s1259 = scalar_select %p1258, %s18, 1
      %s1260 = scalar_lea.vmem %s5, %s1259
      // Predicated region
      $region41: #{discriminator_forward.1} parent=39 // pred_check
        %p1261 = pneg %p146
      $region42: #{discriminator_forward.1} parent=39 // pred_check_branch
        %1263 = sbr.rel (%p1261) target = $region44
      $region43: #{discriminator_forward.1} parent=39 // pred_region
        _
      $region44: #{discriminator_forward.1} parent=39 // pred_fallthru
        _
    $region40: #{discriminator_forward.1} parent=5 // pred_fallthru
      _
    %p1264 = scmp.le.s32.totalorder 2, %s13
    // Predicated region
    $region45: #{discriminator_forward.1} parent=5 // pred_check
      %p1265 = pneg %p1264
    $region46: #{discriminator_forward.1} parent=5 // pred_check_branch
      %1267 = sbr.rel (%p1265) target = $region48
    $region47: #{discriminator_forward.1} parent=5 // pred_region
      %s1268 = ssub.s32 %s13, 2
      // Predicated region
      $region49: #{discriminator_forward.1} parent=47 // pred_check
        %p1269 = pneg %p152
      $region50: #{discriminator_forward.1} parent=47 // pred_check_branch
        %1271 = sbr.rel (%p1269) target = $region52
      $region51: #{discriminator_forward.1} parent=47 // pred_region
        %p1272 = scmp.lt.s32.totalorder %s19, 1
        %s1273 = scalar_select %p1272, %s19, 1
        %s1274 = scalar_lea.vmem %s5, %s1273
      $region52: #{discriminator_forward.1} parent=47 // pred_fallthru
        _
    $region48: #{discriminator_forward.1} parent=5 // pred_fallthru
      _
  $region6: #{discriminator_forward.1} parent=0 // loop_footer
    %s17 = sadd.s32 1, %s13
  $region7: #{discriminator_forward.1} parent=0 // loop_footer_branch
    %12 = sbr.rel target = $region3
  $region8: #{discriminator_forward.1} parent=0 // loop_exit
    _

</llo_original>
